<compile_context>
chip_gen: v6e
topology: v6e:2x2x1
jax: 0.10.0
libtpu: 0.0.40
codegen_flags: <defaults>
</compile_context>

<pallas_src>
import functools

import jax
import jax.numpy as jnp
from jax.experimental import pallas as pl
from jax.experimental.pallas import tpu as pltpu


def _round_up(x, m):
    return (x + m - 1) // m * m


def _choose_tile(n, max_tile=2048):
    """Row-tile size: multiple of 8, capped at 2048 (fits all VMEM budgets)."""
    n8 = _round_up(max(n, 8), 8)
    return n8 if n8 <= max_tile else max_tile


# ----------------------------------------------------------------------------
# Kernels
# ----------------------------------------------------------------------------
def _bigram_train_kernel(idx_ref, tgt_ref, table_ref, logp_table_ref,
                         logits_ref, loss_ref, *, n_actual):
    pid = pl.program_id(0)
    tn, vp = logits_ref.shape

    idx = idx_ref[...]                                              # (TN, 1)
    tgt = tgt_ref[...]                                              # (TN, 1)
    cols = jax.lax.broadcasted_iota(jnp.int32, (tn, vp), 1)         # (TN, Vp)

    # Embedding lookup == one-hot(idx) @ table  -> MXU matmul (128-wide).
    onehot = (cols == idx).astype(jnp.float32)                      # (TN, Vp)
    logits_ref[...] = jnp.dot(onehot, table_ref[...],
                              preferred_element_type=jnp.float32)   # (TN, Vp)

    # Cross entropy: logsumexp is precomputed in the wrapper (log_softmax
    # table), so the per-row loss is just -log_softmax(table)[idx, tgt].
    logp = jnp.dot(onehot, logp_table_ref[...],
                   preferred_element_type=jnp.float32)              # (TN, Vp)
    picked = jnp.sum(jnp.where(cols == tgt, logp, 0.0),
                     axis=-1, keepdims=True)                        # (TN, 1)

    # Mask rows that are padding (global row id >= n_actual).
    rows = pid * tn + jax.lax.broadcasted_iota(jnp.int32, (tn, 1), 0)
    loss_ref[...] = jnp.where(rows < n_actual, -picked, 0.0)        # (TN, 1)


def _bigram_infer_kernel(idx_ref, table_ref, logits_ref):
    tn, vp = logits_ref.shape
    idx = idx_ref[...]                                              # (TN, 1)
    cols = jax.lax.broadcasted_iota(jnp.int32, (tn, vp), 1)
    onehot = (cols == idx).astype(jnp.float32)
    logits_ref[...] = jnp.dot(onehot, table_ref[...],
                              preferred_element_type=jnp.float32)


# ----------------------------------------------------------------------------
# pallas_call wrappers
# ----------------------------------------------------------------------------
@functools.partial(jax.jit, static_argnames=("tn", "v"))
def _bigram_train(idx_flat, tgt_flat, table_padded, logp_padded, *, tn, v):
    n = idx_flat.shape[0]
    vp = table_padded.shape[1]
    n_pad = _round_up(n, tn)
    pad = n_pad - n
    idx_p = jnp.pad(idx_flat, ((0, pad), (0, 0)))
    tgt_p = jnp.pad(tgt_flat, ((0, pad), (0, 0)))

    logits_p, loss_rows = pl.pallas_call(
        functools.partial(_bigram_train_kernel, n_actual=n),
        out_shape=(
            jax.ShapeDtypeStruct((n_pad, vp), jnp.float32),
            jax.ShapeDtypeStruct((n_pad, 1), jnp.float32),
        ),
        grid_spec=pltpu.PrefetchScalarGridSpec(
            num_scalar_prefetch=0,
            grid=(n_pad // tn,),
            in_specs=[
                pl.BlockSpec((tn, 1), lambda i: (i, 0)),
                pl.BlockSpec((tn, 1), lambda i: (i, 0)),
                pl.BlockSpec((vp, vp), lambda i: (0, 0)),   # raw table, resident
                pl.BlockSpec((vp, vp), lambda i: (0, 0)),   # log_softmax table
            ],
            out_specs=(
                pl.BlockSpec((tn, vp), lambda i: (i, 0)),   # lane-dense logits
                pl.BlockSpec((tn, 1), lambda i: (i, 0)),    # per-row loss
            ),
        ),
        compiler_params=pltpu.CompilerParams(
            # Tiles are fully independent now -> shard across TCs on v7x.
            dimension_semantics=("parallel",)),
    )(idx_p, tgt_p, table_padded, logp_padded)

    # Single fused slice (row pad + vocab pad removed in one pass).
    logits = jax.lax.slice(logits_p, (0, 0), (n, v))
    loss = jnp.sum(loss_rows) * (1.0 / n)   # padded rows contribute 0
    return logits, loss


@functools.partial(jax.jit, static_argnames=("tn", "v"))
def _bigram_infer(idx_flat, table_padded, *, tn, v):
    n = idx_flat.shape[0]
    vp = table_padded.shape[1]
    n_pad = _round_up(n, tn)
    pad = n_pad - n
    idx_p = jnp.pad(idx_flat, ((0, pad), (0, 0)))

    logits_p = pl.pallas_call(
        _bigram_infer_kernel,
        out_shape=jax.ShapeDtypeStruct((n_pad, vp), jnp.float32),
        grid_spec=pltpu.PrefetchScalarGridSpec(
            num_scalar_prefetch=0,
            grid=(n_pad // tn,),
            in_specs=[
                pl.BlockSpec((tn, 1), lambda i: (i, 0)),
                pl.BlockSpec((vp, vp), lambda i: (0, 0)),
            ],
            out_specs=pl.BlockSpec((tn, vp), lambda i: (i, 0)),
        ),
        compiler_params=pltpu.CompilerParams(
            dimension_semantics=("parallel",)),
    )(idx_p, table_padded)
    return jax.lax.slice(logits_p, (0, 0), (n, v))


# ----------------------------------------------------------------------------
# Module
# ----------------------------------------------------------------------------
class BigramLM:
    """JAX/Pallas port of the PyTorch BigramLM module (forward only)."""

    def __init__(self, vocab_size, key):
        self.vocab_size = vocab_size
        # nn.Embedding default init: N(0, 1)
        self.token_embedding_table = jax.random.normal(
            key, (vocab_size, vocab_size), dtype=jnp.float32)

        # Lane-dense padded copies for the kernel: (Vp, Vp) with Vp a multiple
        # of 128.  Padded rows are never selected by the one-hot (token ids <
        # vocab_size); padded columns are sliced away by the wrapper, so 0.0
        # padding is safe.  The log-softmax table hoists logsumexp out of the
        # kernel (loss_i = -log_softmax(table)[idx_i, tgt_i]).
        vp = _round_up(max(vocab_size, 128), 128)
        self._vp = vp
        zeros = jnp.zeros((vp, vp), dtype=jnp.float32)
        self._table_padded = zeros.at[:vocab_size, :vocab_size].set(
            self.token_embedding_table)
        logp = jax.nn.log_softmax(self.token_embedding_table, axis=-1)
        self._logp_padded = zeros.at[:vocab_size, :vocab_size].set(logp)

    def forward(self, idx, targets=None):
        B, T = idx.shape
        V = self.vocab_size
        n = B * T
        tn = _choose_tile(n)
        idx_flat = idx.reshape(n, 1).astype(jnp.int32)

        if targets is None:
            # PyTorch returns (B, T, C) logits and loss=None in this branch.
            logits = _bigram_infer(idx_flat, self._table_padded, tn=tn, v=V)
            return logits.reshape(B, T, V), None

        tgt_flat = targets.reshape(n, 1).astype(jnp.int32)
        logits, loss = _bigram_train(
            idx_flat, tgt_flat, self._table_padded, self._logp_padded,
            tn=tn, v=V)
        # PyTorch returns the flattened (B*T, C) view and a scalar mean loss.
        return logits, loss

    def __call__(self, idx, targets=None):
        return self.forward(idx, targets)


# ----------------------------------------------------------------------------
# Reference + test
# ----------------------------------------------------------------------------
def _reference_forward(table, idx, targets):
    """Pure-JAX reference for correctness checking."""
    logits = table[idx]                                   # (B, T, V)
    B, T, V = logits.shape
    logits = logits.reshape(B * T, V)
    tgt = targets.reshape(-1)
    logp = jax.nn.log_softmax(logits, axis=-1)
    loss = -jnp.mean(logp[jnp.arange(B * T), tgt])
    return logits, loss


if __name__ == "__main__":
    key = jax.random.PRNGKey(0)
    k_tab, k_idx, k_tgt, k_idx2, k_tgt2 = jax.random.split(key, 5)

    vocab_size = 65   # e.g. tiny-Shakespeare char vocab
    B, T = 2, 8

    model = BigramLM(vocab_size, k_tab)

    idx = jax.random.randint(k_idx, (B, T), 0, vocab_size, dtype=jnp.int32)
    targets = jax.random.randint(k_tgt, (B, T), 0, vocab_size, dtype=jnp.int32)

    # --- small case: single tile ---------------------------------------
    logits, loss = model(idx, targets)                 # (B*T, V), scalar
    logits = jax.block_until_ready(logits)
    loss = jax.block_until_ready(loss)

    logits_nt, loss_nt = model(idx, None)              # (B, T, V), None
    logits_nt = jax.block_until_ready(logits_nt)
    assert loss_nt is None
    assert logits_nt.shape == (B, T, vocab_size)

    ref_logits, ref_loss = _reference_forward(
        model.token_embedding_table, idx, targets)
    assert logits.shape == (B * T, vocab_size)
    assert jnp.allclose(logits, ref_logits, atol=1e-5), "logits mismatch"
    assert jnp.allclose(loss, ref_loss, atol=1e-4), "loss mismatch"
    assert jnp.allclose(logits_nt.reshape(B * T, vocab_size), ref_logits,
                        atol=1e-5), "inference logits mismatch"

    # --- larger case: exercises the N grid (3 tiles) + row-pad masking ---
    B2, T2 = 5, 1000   # n = 5000 -> tn = 2048, grid = 3, 1144 padded rows
    idx2 = jax.random.randint(k_idx2, (B2, T2), 0, vocab_size, dtype=jnp.int32)
    tgt2 = jax.random.randint(k_tgt2, (B2, T2), 0, vocab_size, dtype=jnp.int32)
    logits2, loss2 = model(idx2, tgt2)
    logits2 = jax.block_until_ready(logits2)
    loss2 = jax.block_until_ready(loss2)
    ref_logits2, ref_loss2 = _reference_forward(
        model.token_embedding_table, idx2, tgt2)
    assert jnp.allclose(logits2, ref_logits2, atol=1e-5), "tiled logits mismatch"
    assert jnp.allclose(loss2, ref_loss2, rtol=1e-5, atol=1e-4), "tiled loss mismatch"

    logits2_nt, _ = model(idx2, None)
    logits2_nt = jax.block_until_ready(logits2_nt)
    assert jnp.allclose(logits2_nt.reshape(B2 * T2, vocab_size), ref_logits2,
                        atol=1e-5), "tiled inference logits mismatch"

    print("KERNEL_OK")
</pallas_src>

<mosaic_0001>
module attributes {stable_mosaic.version = 11 : i64} {
  func.func @_bigram_train_kernel(%arg0: i32, %arg1: memref<16x1xi32, #tpu.memory_space<vmem>>, %arg2: memref<16x1xi32, #tpu.memory_space<vmem>>, %arg3: memref<128x128xf32, #tpu.memory_space<vmem>>, %arg4: memref<128x128xf32, #tpu.memory_space<vmem>>, %arg5: memref<16x128xf32, #tpu.memory_space<vmem>>, %arg6: memref<16x1xf32, #tpu.memory_space<vmem>>) attributes {dimension_semantics = [#tpu.dimension_semantics<parallel>], iteration_bounds = array<i64: 1>, scalar_prefetch = 0 : i64, scratch_operands = 0 : i64, tpu.core_type = #tpu.core_type<tc>, window_params = [{transform_indices = @transform_0, window_bounds = array<i64: 16, 1>}, {transform_indices = @transform_1, window_bounds = array<i64: 16, 1>}, {pipeline_mode = #tpu.pipeline_mode<synchronous>, transform_indices = @transform_2, window_bounds = array<i64: 128, 128>}, {pipeline_mode = #tpu.pipeline_mode<synchronous>, transform_indices = @transform_3, window_bounds = array<i64: 128, 128>}, {transform_indices = @transform_4, window_bounds = array<i64: 16, 128>}, {transform_indices = @transform_5, window_bounds = array<i64: 16, 1>}]} {
    %c0 = arith.constant 0 : index
    %c0_0 = arith.constant 0 : index
    %0 = vector.load %arg1[%c0, %c0_0] : memref<16x1xi32, #tpu.memory_space<vmem>>, vector<16x1xi32>
    %c0_1 = arith.constant 0 : index
    %c0_2 = arith.constant 0 : index
    %1 = vector.load %arg2[%c0_1, %c0_2] : memref<16x1xi32, #tpu.memory_space<vmem>>, vector<16x1xi32>
    %2 = tpu.iota {dimensions = array<i32: 1>} : vector<16x128xi32>
    %3 = vector.broadcast %0 : vector<16x1xi32> to vector<16x128xi32>
    %4 = arith.cmpi eq, %2, %3 : vector<16x128xi32>
    %5 = arith.extui %4 : vector<16x128xi1> to vector<16x128xi32>
    %6 = arith.sitofp %5 : vector<16x128xi32> to vector<16x128xf32>
    %c0_3 = arith.constant 0 : index
    %c0_4 = arith.constant 0 : index
    %7 = vector.load %arg3[%c0_3, %c0_4] : memref<128x128xf32, #tpu.memory_space<vmem>>, vector<128x128xf32>
    %cst = arith.constant dense<0.000000e+00> : vector<16x128xf32>
    %8 = tpu.matmul %6, %7, %cst {dimension_numbers = #tpu.dot_dimension_numbers<[1], [0], [0], [1], [0, 0, 1, 1], [], []>} : vector<16x128xf32>, vector<128x128xf32>, vector<16x128xf32> -> vector<16x128xf32>
    %c0_5 = arith.constant 0 : index
    %c0_6 = arith.constant 0 : index
    %9 = vector.load %arg5[%c0_5, %c0_6] : memref<16x128xf32, #tpu.memory_space<vmem>>, vector<16x128xf32>
    tpu.vector_store %arg5[%c0_5, %c0_6], %8 {strides = array<i32>} : memref<16x128xf32, #tpu.memory_space<vmem>>, vector<16x128xf32>,
    %c0_7 = arith.constant 0 : index
    %c0_8 = arith.constant 0 : index
    %10 = vector.load %arg4[%c0_7, %c0_8] : memref<128x128xf32, #tpu.memory_space<vmem>>, vector<128x128xf32>
    %cst_9 = arith.constant dense<0.000000e+00> : vector<16x128xf32>
    %11 = tpu.matmul %6, %10, %cst_9 {dimension_numbers = #tpu.dot_dimension_numbers<[1], [0], [0], [1], [0, 0, 1, 1], [], []>} : vector<16x128xf32>, vector<128x128xf32>, vector<16x128xf32> -> vector<16x128xf32>
    %12 = vector.broadcast %1 : vector<16x1xi32> to vector<16x128xi32>
    %13 = arith.cmpi eq, %2, %12 : vector<16x128xi32>
    %cst_10 = arith.constant 0.000000e+00 : f32
    %14 = vector.broadcast %cst_10 : f32 to vector<16x128xf32>
    %15 = arith.select %13, %11, %14 : vector<16x128xi1>, vector<16x128xf32>
    %cst_11 = arith.constant dense<0.000000e+00> : vector<16xf32>
    %16 = vector.multi_reduction <add>, %15, %cst_11 [1] : vector<16x128xf32> to vector<16xf32>
    %17 = vector.shape_cast %16 : vector<16xf32> to vector<16x1xf32>
    %c16_i32 = arith.constant 16 : i32
    %18 = arith.muli %arg0, %c16_i32 : i32
    %19 = tpu.iota {dimensions = array<i32: 0>} : vector<16x1xi32>
    %20 = vector.broadcast %18 : i32 to vector<16x1xi32>
    %21 = arith.addi %20, %19 : vector<16x1xi32>
    %c16_i32_12 = arith.constant 16 : i32
    %22 = vector.broadcast %c16_i32_12 : i32 to vector<16x1xi32>
    %23 = arith.cmpi slt, %21, %22 : vector<16x1xi32>
    %cst_13 = arith.constant 0.000000e+00 : f32
    %24 = vector.broadcast %cst_13 : f32 to vector<16x1xf32>
    %25 = arith.subf %24, %17 : vector<16x1xf32>
    %cst_14 = arith.constant 0.000000e+00 : f32
    %26 = vector.broadcast %cst_14 : f32 to vector<16x1xf32>
    %27 = arith.select %23, %25, %26 : vector<16x1xi1>, vector<16x1xf32>
    %c0_15 = arith.constant 0 : index
    %c0_16 = arith.constant 0 : index
    %28 = vector.load %arg6[%c0_15, %c0_16] : memref<16x1xf32, #tpu.memory_space<vmem>>, vector<16x1xf32>
    tpu.vector_store %arg6[%c0_15, %c0_16], %27 {strides = array<i32>} : memref<16x1xf32, #tpu.memory_space<vmem>>, vector<16x1xf32>,
    return
  }
  func.func @transform_0(%arg0: i32) -> (i32, i32) {
    %c0_i32 = arith.constant 0 : i32
    %c0_i32_0 = arith.constant 0 : i32
    return %arg0, %c0_i32 : i32, i32
  }
  func.func @transform_1(%arg0: i32) -> (i32, i32) {
    %c0_i32 = arith.constant 0 : i32
    %c0_i32_0 = arith.constant 0 : i32
    return %arg0, %c0_i32 : i32, i32
  }
  func.func @transform_2(%arg0: i32) -> (i32, i32) {
    %c0_i32 = arith.constant 0 : i32
    %c0_i32_0 = arith.constant 0 : i32
    %c0_i32_1 = arith.constant 0 : i32
    return %c0_i32, %c0_i32_0 : i32, i32
  }
  func.func @transform_3(%arg0: i32) -> (i32, i32) {
    %c0_i32 = arith.constant 0 : i32
    %c0_i32_0 = arith.constant 0 : i32
    %c0_i32_1 = arith.constant 0 : i32
    return %c0_i32, %c0_i32_0 : i32, i32
  }
  func.func @transform_4(%arg0: i32) -> (i32, i32) {
    %c0_i32 = arith.constant 0 : i32
    %c0_i32_0 = arith.constant 0 : i32
    return %arg0, %c0_i32 : i32, i32
  }
  func.func @transform_5(%arg0: i32) -> (i32, i32) {
    %c0_i32 = arith.constant 0 : i32
    %c0_i32_0 = arith.constant 0 : i32
    return %arg0, %c0_i32 : i32, i32
  }
}

</mosaic_0001>

<llo_original>
// kernel: _bigram_train.1
$region0: #{_bigram_train.1}
  #allocation0 [shape = 'u32[]', space=smem, size = 0x4, offset = 0x4, fixed_abs, tag = 'smem constant byte address 0x4 - core index']
  #allocation1 [shape = 'u32[144,128]{1,0:T(1,128)}', space=vmem, size = 0x12000, scoped, tag = 'internal scratch']
  %s0 = inlined_call_operand.vmem [shape: s32[16,1], index: 0, kind: input, shape index: {}]
  %s1 = inlined_call_operand.vmem [shape: s32[16,1], index: 1, kind: input, shape index: {}]
  %s2 = inlined_call_operand.hbm [shape: f32[128,128], index: 2, kind: input, shape index: {}]
  %s3 = inlined_call_operand.hbm [shape: f32[128,128], index: 3, kind: input, shape index: {}]
  %s4 = inlined_call_operand.hbm [shape: f32[16,128], index: 4, kind: output, shape index: {0}]
  %s5 = inlined_call_operand.vmem [shape: f32[16,1], index: 5, kind: output, shape index: {1}]
  %6 = xla_tuple %s4, %s5
  %s7 = sld [smem:[#allocation0]]
  $region42: #{_bigram_train.1} parent=0
    _
  %s9 = ssub.s32 1, %s7
  %s10 = scalar_select 0, %s9, %s7
  $region1: #{_bigram_train.1} parent=0
    #allocation2 [shape = 'u8[65536]{0}', space=vmem, size = 0x10000, scoped, tag = 'input window, operand 2, single buffered']
    #allocation3 [shape = 's32[1]{0}', space=sflag, size = 0x4, scoped, tag = 'scoped memory for _bigram_train.1']
    #allocation4 [shape = 's32[1]{0}', space=sflag, size = 0x4, scoped, tag = 'scoped memory for _bigram_train.1']
    #allocation5 [shape = 'u8[65536]{0}', space=vmem, size = 0x10000, scoped, tag = 'input window, operand 3, single buffered']
    #allocation6 [shape = 's32[1]{0}', space=sflag, size = 0x4, scoped, tag = 'scoped memory for _bigram_train.1']
    #allocation7 [shape = 'u8[8192]{0}', space=vmem, size = 0x2000, scoped, tag = 'output window, operand 0, single buffered']
    %11 = vsyncpa [#allocation3], 0
    %12 = vsyncpa [#allocation6], 0
    %13 = vsyncpa [#allocation4], 0
    // Predicated region
    $region2: #{_bigram_train.1} parent=1 // pred_check
      _
    $region3: #{_bigram_train.1} parent=1 // pred_check_branch
      %15 = sbr.rel (0) target = $region5
    $region4: #{_bigram_train.1} parent=1 // pred_region
      _
    $region5: #{_bigram_train.1} parent=1 // pred_fallthru
      _
    // Predicated region
    $region6: #{_bigram_train.1} parent=1 // pred_check
      _
    $region7: #{_bigram_train.1} parent=1 // pred_check_branch
      %17 = sbr.rel (0) target = $region9
    $region8: #{_bigram_train.1} parent=1 // pred_region
      _
    $region9: #{_bigram_train.1} parent=1 // pred_fallthru
      _
    // Predicated region
    $region10: #{_bigram_train.1} parent=1 // pred_check
      _
    $region11: #{_bigram_train.1} parent=1 // pred_check_branch
      %19 = sbr.rel (0) target = $region13
    $region12: #{_bigram_train.1} parent=1 // pred_region
      %s21 = ssub.s32 2048, 2048
      %22 = vsyncadd [#allocation3], %s21
      %s23 = sshll.u32 [#allocation2], 4
      %s24 = int_to_ptr.vmem [resolvable:$true] %s23
      %29 = dma.hbm_to_vmem [thread:$0]  %s2, 2048, %s24, [#allocation3], 128, 128, 8
    $region13: #{_bigram_train.1} parent=1 // pred_fallthru
      _
    // Predicated region
    $region14: #{_bigram_train.1} parent=1 // pred_check
      _
    $region15: #{_bigram_train.1} parent=1 // pred_check_branch
      %31 = sbr.rel (0) target = $region17
    $region16: #{_bigram_train.1} parent=1 // pred_region
      %s33 = ssub.s32 2048, 2048
      %34 = vsyncadd [#allocation6], %s33
      %s35 = sshll.u32 [#allocation5], 4
      %s36 = int_to_ptr.vmem [resolvable:$true] %s35
      %41 = dma.hbm_to_vmem [thread:$0]  %s3, 2048, %s36, [#allocation6], 128, 128, 8
    $region17: #{_bigram_train.1} parent=1 // pred_fallthru
      _
    // Predicated region
    $region18: #{_bigram_train.1} parent=1 // pred_check
      _
    $region19: #{_bigram_train.1} parent=1 // pred_check_branch
      %43 = sbr.rel (0) target = $region21
    $region20: #{_bigram_train.1} parent=1 // pred_region
      %44 = dma.done [#allocation3], 2048
    $region21: #{_bigram_train.1} parent=1 // pred_fallthru
      _
    // Predicated region
    $region22: #{_bigram_train.1} parent=1 // pred_check
      _
    $region23: #{_bigram_train.1} parent=1 // pred_check_branch
      %46 = sbr.rel (0) target = $region25
    $region24: #{_bigram_train.1} parent=1 // pred_region
      %47 = dma.done [#allocation6], 2048
    $region25: #{_bigram_train.1} parent=1 // pred_fallthru
      _
    %v48 = vld [vmem:[%s0] sm:$0xff]
    %v49 = vld [vmem:[%s0 + $0x8] sm:$0xff]
    %v50 = vld [vmem:[%s1] sm:$0xff]
    %v51 = vld [vmem:[%s1 + $0x8] sm:$0xff]
    %v52 = vlaneseq
    %v53 = vand.u32 %v52, 127
    %54 = vset.pattern.permute.xlu0 0
    %55 = vperm.xlu0 %54, %v48
    %v56 = vpop.permute.xlu0 %55
    %57 = vset.pattern.permute.xlu0 0
    %58 = vperm.xlu0 %57, %v49
    %v59 = vpop.permute.xlu0 %58
    %vm60 = vcmp.eq.s32.totalorder %v53, %v56
    %vm61 = vcmp.eq.s32.totalorder %v53, %v59
    %v62 = vsel %vm60, 1, 0
    %v63 = vsel %vm61, 1, 0
    %v64 = vcvt.s32.f32 %v62
    %v65 = vcvt.s32.f32 %v63
    %v66 = vld [vmem:[#allocation2] sm:$0xff]
    %v67 = vld [vmem:[#allocation2 + $0x8] sm:$0xff]
    %v68 = vld [vmem:[#allocation2 + $0x10] sm:$0xff]
    %v69 = vld [vmem:[#allocation2 + $0x18] sm:$0xff]
    %v70 = vld [vmem:[#allocation2 + $0x20] sm:$0xff]
    %v71 = vld [vmem:[#allocation2 + $0x28] sm:$0xff]
    %v72 = vld [vmem:[#allocation2 + $0x30] sm:$0xff]
    %v73 = vld [vmem:[#allocation2 + $0x38] sm:$0xff]
    %v74 = vld [vmem:[#allocation2 + $0x40] sm:$0xff]
    %v75 = vld [vmem:[#allocation2 + $0x48] sm:$0xff]
    %v76 = vld [vmem:[#allocation2 + $0x50] sm:$0xff]
    %v77 = vld [vmem:[#allocation2 + $0x58] sm:$0xff]
    %v78 = vld [vmem:[#allocation2 + $0x60] sm:$0xff]
    %v79 = vld [vmem:[#allocation2 + $0x68] sm:$0xff]
    %v80 = vld [vmem:[#allocation2 + $0x70] sm:$0xff]
    %v81 = vld [vmem:[#allocation2 + $0x78] sm:$0xff]
    %82 = vmatprep.subr.mxu0 0.0
    %83 = vmatpush1.msra.mxu0 %v81
    %84 = vmatprep.subr.mxu0 0.0
    %85 = vmatpush1.msra.mxu0 %v80
    %86 = vmatprep.subr.mxu0 0.0
    %87 = vmatpush1.msra.mxu0 %v79
    %88 = vmatprep.subr.mxu0 0.0
    %89 = vmatpush1.msra.mxu0 %v78
    %90 = vmatprep.subr.mxu0 0.0
    %91 = vmatpush1.msra.mxu0 %v77
    %92 = vmatprep.subr.mxu0 0.0
    %93 = vmatpush1.msra.mxu0 %v76
    %94 = vmatprep.subr.mxu0 0.0
    %95 = vmatpush1.msra.mxu0 %v75
    %96 = vmatprep.subr.mxu0 0.0
    %97 = vmatpush1.msra.mxu0 %v74
    %98 = vmatprep.subr.mxu0 0.0
    %99 = vmatpush1.msra.mxu0 %v73
    %100 = vmatprep.subr.mxu0 0.0
    %101 = vmatpush1.msra.mxu0 %v72
    %102 = vmatprep.subr.mxu0 0.0
    %103 = vmatpush1.msra.mxu0 %v71
    %104 = vmatprep.subr.mxu0 0.0
    %105 = vmatpush1.msra.mxu0 %v70
    %106 = vmatprep.subr.mxu0 0.0
    %107 = vmatpush1.msra.mxu0 %v69
    %108 = vmatprep.subr.mxu0 0.0
    %109 = vmatpush1.msra.mxu0 %v68
    %110 = vmatprep.subr.mxu0 0.0
    %111 = vmatpush1.msra.mxu0 %v67
    %112 = vmatprep.subr.mxu0 0.0
    %113 = vmatpush1.msra.mxu0 %v66
    %114 = vmatprep.subr.mxu0 0.0
    %115 = vmatpush2.msra.mxu0 0.0
    %116 = vmatprep.subr.mxu0 0.0
    %117 = vmatpush2.msra.mxu0 0.0
    %118 = vmatprep.subr.mxu0 0.0
    %119 = vmatpush2.msra.mxu0 0.0
    %120 = vmatprep.subr.mxu0 0.0
    %121 = vmatpush2.msra.mxu0 0.0
    %122 = vmatprep.subr.mxu0 0.0
    %123 = vmatpush2.msra.mxu0 0.0
    %124 = vmatprep.subr.mxu0 0.0
    %125 = vmatpush2.msra.mxu0 0.0
    %126 = vmatprep.subr.mxu0 0.0
    %127 = vmatpush2.msra.mxu0 0.0
    %128 = vmatprep.subr.mxu0 0.0
    %129 = vmatpush2.msra.mxu0 0.0
    %130 = vmatprep.subr.mxu0 0.0
    %131 = vmatpush2.msra.mxu0 0.0
    %132 = vmatprep.subr.mxu0 0.0
    %133 = vmatpush2.msra.mxu0 0.0
    %134 = vmatprep.subr.mxu0 0.0
    %135 = vmatpush2.msra.mxu0 0.0
    %136 = vmatprep.subr.mxu0 0.0
    %137 = vmatpush2.msra.mxu0 0.0
    %138 = vmatprep.subr.mxu0 0.0
    %139 = vmatpush2.msra.mxu0 0.0
    %140 = vmatprep.subr.mxu0 0.0
    %141 = vmatpush2.msra.mxu0 0.0
    %142 = vmatprep.subr.mxu0 0.0
    %143 = vmatpush2.msra.mxu0 0.0
    %144 = vmatprep.subr.mxu0 0.0
    %145 = vmatpush2.msra.mxu0 0.0
    %146 = vmatprep.mubr.f32.mxu0 0.0
    %147 = vmatmul.mubr.f32.gmra.mxu0 %v64
    %v148 = vpop.f32.mrf.mxu0
    %v149 = vadd.f32 0.0, %v148
    %v150 = vpop.f32.mrf.mxu0
    %151 = vmatprep.mubr.f32.mxu0 0.0
    %152 = vmatmul.mubr.f32.gmra.mxu0 %v65
    %v153 = vpop.f32.mrf.mxu0
    %v154 = vadd.f32 0.0, %v153
    %v155 = vpop.f32.mrf.mxu0
    %156 = vdwg.mxu0
    %157 = vst [vmem:[#allocation7] sm:$0xff] %v149
    %158 = vst [vmem:[#allocation7 + $0x8] sm:$0xff] %v154
    %v159 = vld [vmem:[#allocation5] sm:$0xff]
    %v160 = vld [vmem:[#allocation5 + $0x8] sm:$0xff]
    %v161 = vld [vmem:[#allocation5 + $0x10] sm:$0xff]
    %v162 = vld [vmem:[#allocation5 + $0x18] sm:$0xff]
    %v163 = vld [vmem:[#allocation5 + $0x20] sm:$0xff]
    %v164 = vld [vmem:[#allocation5 + $0x28] sm:$0xff]
    %v165 = vld [vmem:[#allocation5 + $0x30] sm:$0xff]
    %v166 = vld [vmem:[#allocation5 + $0x38] sm:$0xff]
    %v167 = vld [vmem:[#allocation5 + $0x40] sm:$0xff]
    %v168 = vld [vmem:[#allocation5 + $0x48] sm:$0xff]
    %v169 = vld [vmem:[#allocation5 + $0x50] sm:$0xff]
    %v170 = vld [vmem:[#allocation5 + $0x58] sm:$0xff]
    %v171 = vld [vmem:[#allocation5 + $0x60] sm:$0xff]
    %v172 = vld [vmem:[#allocation5 + $0x68] sm:$0xff]
    %v173 = vld [vmem:[#allocation5 + $0x70] sm:$0xff]
    %v174 = vld [vmem:[#allocation5 + $0x78] sm:$0xff]
    %175 = vmatprep.subr.mxu0 0.0
    %176 = vmatpush1.msra.mxu0 %v174
    %177 = vmatprep.subr.mxu0 0.0
    %178 = vmatpush1.msra.mxu0 %v173
    %179 = vmatprep.subr.mxu0 0.0
    %180 = vmatpush1.msra.mxu0 %v172
    %181 = vmatprep.subr.mxu0 0.0
    %182 = vmatpush1.msra.mxu0 %v171
    %183 = vmatprep.subr.mxu0 0.0
    %184 = vmatpush1.msra.mxu0 %v170
    %185 = vmatprep.subr.mxu0 0.0
    %186 = vmatpush1.msra.mxu0 %v169
    %187 = vmatprep.subr.mxu0 0.0
    %188 = vmatpush1.msra.mxu0 %v168
    %189 = vmatprep.subr.mxu0 0.0
    %190 = vmatpush1.msra.mxu0 %v167
    %191 = vmatprep.subr.mxu0 0.0
    %192 = vmatpush1.msra.mxu0 %v166
    %193 = vmatprep.subr.mxu0 0.0
    %194 = vmatpush1.msra.mxu0 %v165
    %195 = vmatprep.subr.mxu0 0.0
    %196 = vmatpush1.msra.mxu0 %v164
    %197 = vmatprep.subr.mxu0 0.0
    %198 = vmatpush1.msra.mxu0 %v163
    %199 = vmatprep.subr.mxu0 0.0
    %200 = vmatpush1.msra.mxu0 %v162
    %201 = vmatprep.subr.mxu0 0.0
    %202 = vmatpush1.msra.mxu0 %v161
    %203 = vmatprep.subr.mxu0 0.0
    %204 = vmatpush1.msra.mxu0 %v160
    %205 = vmatprep.subr.mxu0 0.0
    %206 = vmatpush1.msra.mxu0 %v159
    %207 = vmatprep.subr.mxu0 0.0
    %208 = vmatpush2.msra.mxu0 0.0
    %209 = vmatprep.subr.mxu0 0.0
    %210 = vmatpush2.msra.mxu0 0.0
    %211 = vmatprep.subr.mxu0 0.0
    %212 = vmatpush2.msra.mxu0 0.0
    %213 = vmatprep.subr.mxu0 0.0
    %214 = vmatpush2.msra.mxu0 0.0
    %215 = vmatprep.subr.mxu0 0.0
    %216 = vmatpush2.msra.mxu0 0.0
    %217 = vmatprep.subr.mxu0 0.0
    %218 = vmatpush2.msra.mxu0 0.0
    %219 = vmatprep.subr.mxu0 0.0
    %220 = vmatpush2.msra.mxu0 0.0
    %221 = vmatprep.subr.mxu0 0.0
    %222 = vmatpush2.msra.mxu0 0.0
    %223 = vmatprep.subr.mxu0 0.0
    %224 = vmatpush2.msra.mxu0 0.0
    %225 = vmatprep.subr.mxu0 0.0
    %226 = vmatpush2.msra.mxu0 0.0
    %227 = vmatprep.subr.mxu0 0.0
    %228 = vmatpush2.msra.mxu0 0.0
    %229 = vmatprep.subr.mxu0 0.0
    %230 = vmatpush2.msra.mxu0 0.0
    %231 = vmatprep.subr.mxu0 0.0
    %232 = vmatpush2.msra.mxu0 0.0
    %233 = vmatprep.subr.mxu0 0.0
    %234 = vmatpush2.msra.mxu0 0.0
    %235 = vmatprep.subr.mxu0 0.0
    %236 = vmatpush2.msra.mxu0 0.0
    %237 = vmatprep.subr.mxu0 0.0
    %238 = vmatpush2.msra.mxu0 0.0
    %239 = vmatprep.mubr.f32.mxu0 0.0
    %240 = vmatmul.mubr.f32.gmra.mxu0 %v64
    %v241 = vpop.f32.mrf.mxu0
    %v242 = vadd.f32 0.0, %v241
    %v243 = vpop.f32.mrf.mxu0
    %244 = vmatprep.mubr.f32.mxu0 0.0
    %245 = vmatmul.mubr.f32.gmra.mxu0 %v65
    %v246 = vpop.f32.mrf.mxu0
    %v247 = vadd.f32 0.0, %v246
    %v248 = vpop.f32.mrf.mxu0
    %249 = vdwg.mxu0
    %250 = vset.pattern.permute.xlu0 0
    %251 = vperm.xlu0 %250, %v50
    %v252 = vpop.permute.xlu0 %251
    %253 = vset.pattern.permute.xlu0 0
    %254 = vperm.xlu0 %253, %v51
    %v255 = vpop.permute.xlu0 %254
    %vm256 = vcmp.eq.s32.totalorder %v53, %v252
    %vm257 = vcmp.eq.s32.totalorder %v53, %v255
    %v258 = vsel %vm256, %v242, 0.0
    %v259 = vsel %vm257, %v247, 0.0
    %260 = vadd.xlane.f32.xlu0 %v258
    %v261 = vpop.xlane.xlu0 %260
    %262 = vadd.xlane.f32.xlu0 %v259
    %v263 = vpop.xlane.xlu0 %262
    %s264 = smul.u32 0, 16
    %v265 = vlaneseq
    %v266 = vshrl.u32 %v265, 7
    %v267 = vadd.s32 %v266, 8
    %v268 = vstv %s264
    %v269 = vadd.s32 %v268, %v266
    %v270 = vadd.s32 %v268, %v267
    %vm271 = vcmp.lt.s32.totalorder %v269, 16
    %vm272 = vcmp.lt.s32.totalorder %v270, 16
    %v273 = vsub.f32 0.0, %v261
    %v274 = vsub.f32 0.0, %v263
    %v275 = vsel %vm271, %v273, 0.0
    %v276 = vsel %vm272, %v274, 0.0
    %vm277 = vcmask 7168
    %278 = vst.msk [vmem:[%s5] sm:$0xff] %vm277, %v275
    %279 = vst.msk [vmem:[%s5 + $0x8] sm:$0xff] %vm277, %v276
    // Predicated region
    $region26: #{_bigram_train.1} parent=1 // pred_check
      _
    $region27: #{_bigram_train.1} parent=1 // pred_check_branch
      %281 = sbr.rel (0) target = $region29
    $region28: #{_bigram_train.1} parent=1 // pred_region
      %s283 = ssub.s32 256, 256
      %284 = vsyncadd [#allocation4], %s283
      %s285 = sshll.u32 [#allocation7], 4
      %s286 = int_to_ptr.vmem [resolvable:$true] %s285
      %291 = dma.vmem_to_hbm [thread:$0]  %s286, 256, %s4, [#allocation4], 128, 128, 8
    $region29: #{_bigram_train.1} parent=1 // pred_fallthru
      _
    // Predicated region
    $region30: #{_bigram_train.1} parent=1 // pred_check
      _
    $region31: #{_bigram_train.1} parent=1 // pred_check_branch
      %293 = sbr.rel (0) target = $region33
    $region32: #{_bigram_train.1} parent=1 // pred_region
      _
    $region33: #{_bigram_train.1} parent=1 // pred_fallthru
      _
    // Predicated region
    $region34: #{_bigram_train.1} parent=1 // pred_check
      _
    $region35: #{_bigram_train.1} parent=1 // pred_check_branch
      %295 = sbr.rel (0) target = $region37
    $region36: #{_bigram_train.1} parent=1 // pred_region
      %296 = dma.done [#allocation4], 256
    $region37: #{_bigram_train.1} parent=1 // pred_fallthru
      _
    // Predicated region
    $region38: #{_bigram_train.1} parent=1 // pred_check
      _
    $region39: #{_bigram_train.1} parent=1 // pred_check_branch
      %298 = sbr.rel (0) target = $region41
    $region40: #{_bigram_train.1} parent=1 // pred_region
      _
    $region41: #{_bigram_train.1} parent=1 // pred_fallthru
      _
    %299 = vsyncpa [#allocation3], 1
    %300 = vsyncpa [#allocation6], 1
    %301 = vsyncpa [#allocation4], 1

</llo_original>
